<compile_context>
chip_gen: v7x
topology: tpu7x:2x2x1
jax: 0.10.0
libtpu: 0.0.40
codegen_flags: <defaults>
</compile_context>

<pallas_src>
import jax
import jax.numpy as jnp
from jax.experimental import pallas as pl
from jax.experimental.pallas import tpu as pltpu


def _mdca_conf_sum_kernel(logits_ref, conf_ref):
    """Accumulate per-class softmax-probability sums for one batch tile."""
    @pl.when(pl.program_id(1) == 0)
    def _init():
        conf_ref[...] = jnp.zeros_like(conf_ref)

    x = logits_ref[...].astype(jnp.float32)            # (TB, C) f32 compute
    tb, classes = x.shape

    # Numerically-stable softmax over the class (lane) axis; normalize via
    # reciprocal + multiply (EUP) instead of a full (TB, C) divide.
    m = jnp.max(x, axis=1, keepdims=True)
    e = jnp.exp(x - m)
    r = pl.reciprocal(jnp.sum(e, axis=1, keepdims=True), approx=False)
    p = e * r                                          # (TB, C)

    # Fold TB rows into 8 sublane rows with plain vreg adds; the final 8-row
    # cross-sublane reduction happens once, in the wrapper.
    conf_ref[...] += jnp.sum(p.reshape(tb // 8, 8, classes), axis=0)


def mdca_loss(output: jax.Array, target: jax.Array, *,
              block_batch: int | None = None, num_splits: int = 2) -> jax.Array:
    """MDCA loss.

    output: (B, C) float logits (f32 or bf16; feeding bf16 halves HBM traffic,
            the kernel upcasts to f32 in-register — do NOT upcast here).
    target: (B,) integer labels.
    """
    batch, classes = output.shape
    elem_bytes = jnp.dtype(output.dtype).itemsize

    # --- batch-tile size: byte-targeted, VMEM-safe on v5e/v6e/v7x ----------
    # VMEM cost per row is lane-padded to >=128 regardless of C.  Budget
    # ~24 MiB for (2 x input double-buffer) + (~4 f32 temporaries) so the
    # 32 MiB scoped limit holds even on v7x's smaller 64 MiB VMEM.
    c_pad = ((classes + 127) // 128) * 128
    if block_batch is None:
        bytes_per_row = c_pad * (2 * elem_bytes + 4 * 4)
        rows = (24 * 1024 * 1024) // bytes_per_row
    else:
        rows = block_batch
    rows = max(8, min(int(rows), 32768))
    rows = (rows // 8) * 8
    # Never use a bigger tile than the (per-split) batch actually needs.
    per_split = ((-(-batch // max(1, num_splits)) + 7) // 8) * 8
    tb = max(8, min(rows, per_split))

    total_tiles = -(-batch // tb)
    num_splits = max(1, min(num_splits, total_tiles))
    tiles_per_split = -(-total_tiles // num_splits)
    padded = num_splits * tiles_per_split * tb
    pad = padded - batch

    logits = output
    if pad:
        # Zero-padded rows have a uniform softmax (exactly 1/C per class);
        # their total contribution (pad / C per class) is subtracted after the
        # kernel, so no per-tile row masking is needed inside the kernel.
        logits = jnp.pad(logits, ((0, pad), (0, 0)))

    conf_parts = pl.pallas_call(
        _mdca_conf_sum_kernel,
        out_shape=jax.ShapeDtypeStruct((num_splits * 8, classes), jnp.float32),
        grid=(num_splits, tiles_per_split),
        in_specs=[
            pl.BlockSpec((tb, classes),
                         lambda s, i: (s * tiles_per_split + i, 0)),
        ],
        out_specs=pl.BlockSpec((8, classes), lambda s, i: (s, 0)),
        compiler_params=pltpu.CompilerParams(
            dimension_semantics=("parallel", "arbitrary"),
            vmem_limit_bytes=32 * 1024 * 1024,
        ),
    )(logits)

    # --- finalize in plain JAX (tiny, lane-sparse work) ---------------------
    conf_sum = jnp.sum(conf_parts, axis=0)                         # (C,)
    if pad:
        conf_sum = conf_sum - jnp.float32(pad) / jnp.float32(classes)
    counts = jnp.zeros((classes,), jnp.float32).at[target].add(1.0)
    return jnp.sum(jnp.abs(conf_sum - counts)) / jnp.float32(batch * classes)


def _mdca_reference(output, target):
    # pure-JAX reference mirroring the PyTorch module
    p = jax.nn.softmax(output.astype(jnp.float32), axis=1)
    _, classes = output.shape
    avg_conf = jnp.mean(p, axis=0)
    onehot = jax.nn.one_hot(target, classes, dtype=jnp.float32)
    avg_count = jnp.mean(onehot, axis=0)
    return jnp.sum(jnp.abs(avg_conf - avg_count)) / classes


if __name__ == "__main__":
    key = jax.random.PRNGKey(0)
    k1, k2 = jax.random.split(key)

    batch, classes = 20, 16
    logits = jax.random.normal(k1, (batch, classes), dtype=jnp.float32)
    target = jax.random.randint(k2, (batch,), 0, classes, dtype=jnp.int32)

    ref = _mdca_reference(logits, target)

    # Small explicit tile -> multi-step grid, two parallel splits, padded
    # tail: exercises init/accumulate and the pad-correction path.
    loss_tiled = mdca_loss(logits, target, block_batch=8)
    jax.block_until_ready(loss_tiled)
    assert jnp.allclose(loss_tiled, ref, atol=1e-5, rtol=1e-5), (loss_tiled, ref)

    # Default (auto) tile size.
    loss_auto = mdca_loss(logits, target)
    jax.block_until_ready(loss_auto)
    assert jnp.allclose(loss_auto, ref, atol=1e-5, rtol=1e-5), (loss_auto, ref)

    print("KERNEL_OK")
</pallas_src>

<mosaic_0001>
module attributes {stable_mosaic.version = 11 : i64} {
  func.func @_mdca_conf_sum_kernel(%arg0: i32, %arg1: i32, %arg2: memref<8x16xf32, #tpu.memory_space<vmem>>, %arg3: memref<8x16xf32, #tpu.memory_space<vmem>>) attributes {dimension_semantics = [#tpu.dimension_semantics<parallel>, #tpu.dimension_semantics<arbitrary>], iteration_bounds = array<i64: 2, 2>, scalar_prefetch = 0 : i64, scratch_operands = 0 : i64, tpu.core_type = #tpu.core_type<tc>, window_params = [{transform_indices = @transform_0, window_bounds = array<i64: 8, 16>}, {transform_indices = @transform_1, window_bounds = array<i64: 8, 16>}]} {
    %c0_i32 = arith.constant 0 : i32
    %0 = arith.cmpi eq, %arg1, %c0_i32 : i32
    %1 = arith.extui %0 : i1 to i32
    %c0_i32_0 = arith.constant 0 : i32
    %2 = arith.cmpi ne, %1, %c0_i32_0 : i32
    scf.if %2 {
      %cst_8 = arith.constant 0.000000e+00 : f32
      %19 = vector.broadcast %cst_8 : f32 to vector<8x16xf32>
      %c0_9 = arith.constant 0 : index
      %c0_10 = arith.constant 0 : index
      %20 = vector.load %arg3[%c0_9, %c0_10] : memref<8x16xf32, #tpu.memory_space<vmem>>, vector<8x16xf32>
      tpu.vector_store %arg3[%c0_9, %c0_10], %19 {strides = array<i32>} : memref<8x16xf32, #tpu.memory_space<vmem>>, vector<8x16xf32>,
    } else {
    }
    %c0 = arith.constant 0 : index
    %c0_1 = arith.constant 0 : index
    %3 = vector.load %arg2[%c0, %c0_1] : memref<8x16xf32, #tpu.memory_space<vmem>>, vector<8x16xf32>
    %cst = arith.constant dense<0xFF800000> : vector<8xf32>
    %4 = vector.multi_reduction <maximumf>, %3, %cst [1] : vector<8x16xf32> to vector<8xf32>
    %5 = vector.shape_cast %4 : vector<8xf32> to vector<8x1xf32>
    %6 = vector.broadcast %5 : vector<8x1xf32> to vector<8x16xf32>
    %7 = arith.subf %3, %6 : vector<8x16xf32>
    %8 = math.exp %7 : vector<8x16xf32>
    %cst_2 = arith.constant dense<0.000000e+00> : vector<8xf32>
    %9 = vector.multi_reduction <add>, %8, %cst_2 [1] : vector<8x16xf32> to vector<8xf32>
    %10 = vector.shape_cast %9 : vector<8xf32> to vector<8x1xf32>
    %11 = tpu.reciprocal %10 : vector<8x1xf32> -> vector<8x1xf32>
    %12 = vector.broadcast %11 : vector<8x1xf32> to vector<8x16xf32>
    %13 = arith.mulf %8, %12 : vector<8x16xf32>
    %c0_3 = arith.constant 0 : index
    %c0_4 = arith.constant 0 : index
    %14 = vector.load %arg3[%c0_3, %c0_4] : memref<8x16xf32, #tpu.memory_space<vmem>>, vector<8x16xf32>
    %15 = vector.shape_cast %13 : vector<8x16xf32> to vector<1x8x16xf32>
    %cst_5 = arith.constant dense<0.000000e+00> : vector<8x16xf32>
    %16 = vector.multi_reduction <add>, %15, %cst_5 [0] : vector<1x8x16xf32> to vector<8x16xf32>
    %17 = arith.addf %14, %16 : vector<8x16xf32>
    %c0_6 = arith.constant 0 : index
    %c0_7 = arith.constant 0 : index
    %18 = vector.load %arg3[%c0_6, %c0_7] : memref<8x16xf32, #tpu.memory_space<vmem>>, vector<8x16xf32>
    tpu.vector_store %arg3[%c0_6, %c0_7], %17 {strides = array<i32>} : memref<8x16xf32, #tpu.memory_space<vmem>>, vector<8x16xf32>,
    return
  }
  func.func @transform_0(%arg0: i32, %arg1: i32) -> (i32, i32) {
    %c2_i32 = arith.constant 2 : i32
    %0 = arith.muli %arg0, %c2_i32 : i32
    %1 = arith.addi %0, %arg1 : i32
    %c0_i32 = arith.constant 0 : i32
    %c0_i32_0 = arith.constant 0 : i32
    return %1, %c0_i32 : i32, i32
  }
  func.func @transform_1(%arg0: i32, %arg1: i32) -> (i32, i32) {
    %c0_i32 = arith.constant 0 : i32
    %c0_i32_0 = arith.constant 0 : i32
    return %arg0, %c0_i32 : i32, i32
  }
}

</mosaic_0001>

<llo_original>
// kernel: tpu_custom_call.1
$region0: #{tpu_custom_call.1}
  #allocation0 [shape = 'u32[]', space=smem, size = 0x4, offset = 0x4, fixed_abs, tag = 'smem constant byte address 0x4 - core index']
  #allocation1 [shape = 'u32[144,128]{1,0:T(1,128)}', space=vmem, size = 0x12000, scoped, tag = 'internal scratch']
  %s0 = inlined_call_operand.vmem [shape: f32[32,16], index: 0, kind: input, shape index: {}]
  %s1 = inlined_call_operand.hbm [shape: f32[16,16], index: 1, kind: output, shape index: {}]
  %s2 = sld [smem:[#allocation0]]
  $region41: #{tpu_custom_call.1} parent=0
    _
  %s4 = ssub.s32 1, %s2
  %s5 = scalar_select 0, %s4, %s2
  $region1: #{tpu_custom_call.1} parent=0
    #allocation2 [shape = 'u8[8192]{0}', space=vmem, size = 0x2000, scoped, tag = 'output window, operand 0']
    #allocation3 [shape = 's32[2]{0}', space=sflag, size = 0x8, scoped, tag = 'scoped memory for tpu_custom_call.1']
    %6 = vsyncpa [#allocation3], 0
    %s7 = scalar_lea.sflag [#allocation3], 1
    %8 = vsyncpa %s7, 0
    loop: start=0, step=1, limit=6
    $region2: #{tpu_custom_call.1} parent=1 // loop_pre_header
      _
    $region3: #{tpu_custom_call.1} parent=1 // loop_header
      %s10 = sphi 0, %s14
      %p11 = scmp.ge.s32.totalorder %s10, 6
      %s17 = sphi 0, %s29
      %s18 = sphi 0, %s25
      %s19 = sphi 0, %s17
      %s20 = sphi 0, %s18
      %s21 = sphi 0, %s19
      %s22 = sphi 0, %s20
      %s36 = sphi 0, %s38
      %s39 = sphi 0, %s36
      %s40 = sphi 0, %s39
      %s56 = sphi 0, %s40
      %s62 = sphi 0, %s64
      %s65 = sphi 0, %s62
      %s66 = sphi 0, %s65
      %s82 = sphi 0, %s66
    $region4: #{tpu_custom_call.1} parent=1 // loop_header_branch
      %13 = sbr.rel (%p11) target = $region8
    $region5: #{tpu_custom_call.1} parent=1 // loop_body
      %s15 = ssub.s32 %s10, 1
      %s16 = ssub.s32 %s10, 2
      %s23 = sadd.s32 1, %s18
      %p24 = scmp.ge.s32.totalorder %s23, 2
      %s25 = scalar_select %p24, 0, %s23
      %s26 = sadd.s32 1, %s17
      %s27 = scalar_select %p24, %s26, %s17
      %p28 = scmp.ge.s32.totalorder %s27, 2
      %s29 = scalar_select %p28, 0, %s27
      %s30 = smul.u32 %s17, 2
      %s31 = sadd.s32 %s30, %s18
      %s32 = smul.u32 %s29, 2
      %s33 = sadd.s32 %s32, %s25
      %s34 = ssub.s32 %s31, %s33
      %p35 = scmp.eq.s32.totalorder %s34, 0
      %s37 = sadd.s32 %s36, 1
      %s38 = scalar_select %p35, %s36, %s37
      %p41 = pneg %p35
      %p42 = scmp.eq.s32.totalorder %s10, 3
      %p43 = por %p41, %p42
      %p44 = scmp.ne.s32.totalorder %s36, %s39
      %p45 = scmp.eq.s32.totalorder %s10, 0
      %p46 = por %p44, %p45
      %p47 = scmp.ne.s32.totalorder %s36, %s39
      %p48 = scmp.eq.s32.totalorder %s15, 3
      %p49 = por %p47, %p48
      %p50 = scmp.ne.s32.totalorder %s39, %s40
      %p51 = scmp.eq.s32.totalorder %s15, 0
      %p52 = por %p50, %p51
      %p53 = scmp.ne.s32.totalorder %s39, %s40
      %p54 = scmp.eq.s32.totalorder %s16, 3
      %p55 = por %p53, %p54
      %p57 = scmp.ne.s32.totalorder %s40, %s56
      %p58 = scmp.eq.s32.totalorder %s16, 0
      %p59 = por %p57, %p58
      %s60 = ssub.s32 %s17, %s29
      %p61 = scmp.eq.s32.totalorder %s60, 0
      %s63 = sadd.s32 %s62, 1
      %s64 = scalar_select %p61, %s62, %s63
      %p67 = pneg %p61
      %p68 = scmp.eq.s32.totalorder %s10, 3
      %p69 = por %p67, %p68
      %p70 = scmp.ne.s32.totalorder %s62, %s65
      %p71 = scmp.eq.s32.totalorder %s10, 0
      %p72 = por %p70, %p71
      %p73 = scmp.ne.s32.totalorder %s62, %s65
      %p74 = scmp.eq.s32.totalorder %s15, 3
      %p75 = por %p73, %p74
      %p76 = scmp.ne.s32.totalorder %s65, %s66
      %p77 = scmp.eq.s32.totalorder %s15, 0
      %p78 = por %p76, %p77
      %p79 = scmp.ne.s32.totalorder %s65, %s66
      %p80 = scmp.eq.s32.totalorder %s16, 3
      %p81 = por %p79, %p80
      %p83 = scmp.ne.s32.totalorder %s66, %s82
      %p84 = scmp.eq.s32.totalorder %s16, 0
      %p85 = por %p83, %p84
      %p86 = scmp.le.s32.totalorder 1, %s10
      %p87 = scmp.lt.s32.totalorder %s10, 5
      %p88 = pnand %p86, %p87
      %p89 = pneg %p88
      // Predicated region
      $region9: #{tpu_custom_call.1} parent=5 // pred_check
        _
      $region10: #{tpu_custom_call.1} parent=5 // pred_check_branch
        %91 = sbr.rel (%p88) target = $region12
      $region11: #{tpu_custom_call.1} parent=5 // pred_region
        %s92 = ssub.s32 %s10, 1
      $region12: #{tpu_custom_call.1} parent=5 // pred_fallthru
        _
      %p93 = scmp.lt.s32.totalorder %s10, 4
      // Predicated region
      $region13: #{tpu_custom_call.1} parent=5 // pred_check
        %p94 = pneg %p93
      $region14: #{tpu_custom_call.1} parent=5 // pred_check_branch
        %96 = sbr.rel (%p94) target = $region16
      $region15: #{tpu_custom_call.1} parent=5 // pred_region
        // Predicated region
        $region17: #{tpu_custom_call.1} parent=15 // pred_check
          %p97 = pneg %p46
        $region18: #{tpu_custom_call.1} parent=15 // pred_check_branch
          %99 = sbr.rel (%p97) target = $region20
        $region19: #{tpu_custom_call.1} parent=15 // pred_region
          %s100 = smul.u32 %s17, 2
          %s101 = sadd.s32 %s100, %s18
          %p102 = scmp.lt.s32.totalorder %s101, 3
          %s103 = scalar_select %p102, %s101, 3
          %s104 = smul.addr %s103, 8
          %s105 = scalar_lea.vmem %s0, %s104
          %s106 = smul.u32 %s17, 2
          %s107 = sadd.s32 %s106, %s18
        $region20: #{tpu_custom_call.1} parent=15 // pred_fallthru
          _
      $region16: #{tpu_custom_call.1} parent=5 // pred_fallthru
        _
      %p108 = scmp.le.s32.totalorder 1, %s10
      %p109 = scmp.lt.s32.totalorder %s10, 5
      %p110 = pnand %p108, %p109
      %p111 = pneg %p110
      // Predicated region
      $region21: #{tpu_custom_call.1} parent=5 // pred_check
        _
      $region22: #{tpu_custom_call.1} parent=5 // pred_check_branch
        %113 = sbr.rel (%p110) target = $region24
      $region23: #{tpu_custom_call.1} parent=5 // pred_region
        %s114 = ssub.s32 %s10, 1
        %s115 = smul.u32 %s19, 2
        %s116 = sadd.s32 %s115, %s20
        %p117 = scmp.lt.s32.totalorder %s116, 3
        %s118 = scalar_select %p117, %s116, 3
        %s119 = smul.addr %s118, 8
        %s120 = scalar_lea.vmem %s0, %s119
        %p121 = pneg %p52
        %p122 = pneg %p49
        %p123 = pneg %p78
        %p124 = pneg %p75
        %s125 = sand.u32 %s65, 1
        %s126 = scalar_lea.sflag [#allocation3], %s125
        %s127 = sand.u32 %s65, 1
        %s128 = smul.addr %s127, 8
        %s129 = scalar_lea.vmem [#allocation2], %s128
        %s130 = smul.u32 %s19, 2
        %s131 = sadd.s32 %s130, %s20
        %p132 = scmp.lt.s32.totalorder %s131, 3
        %s133 = scalar_select %p132, %s131, 3
        %s134 = smul.addr %s133, 8
        %s135 = scalar_lea.vmem %s0, %s134
        %s136 = smul.u32 %s19, 2
        %s137 = sadd.s32 %s136, %s20
        %p138 = scmp.eq.s32.totalorder %s20, 0
        // Predicated region
        $region25: #{tpu_custom_call.1} parent=23 // pred_check
          %p139 = pneg %p138
        $region26: #{tpu_custom_call.1} parent=23 // pred_check_branch
          %141 = sbr.rel (%p139) target = $region28
        $region27: #{tpu_custom_call.1} parent=23 // pred_region
          %vm142 = vcmask 130048
          %143 = vst.msk [vmem:[%s129] sm:$0xff] %vm142, 0.0
        $region28: #{tpu_custom_call.1} parent=23 // pred_fallthru
          _
        %v144 = vld [vmem:[%s135] sm:$0xff]
        %vm145 = vcmask 130048
        %v146 = vsel %vm145, %v144, -inf
        %147 = vmax.xlane.f32.xlu0 %v146
        %v148 = vpop.xlane.xlu0 %147
        %v149 = vsub.f32 %v144, %v148
        %v150 = vmul.f32 %v149, 1.442695
        %v151 = vpow.pop %v150
        %v152 = vsel %vm145, %v151, 0.0
        %153 = vadd.xlane.f32.xlu0 %v152
        %v154 = vpop.xlane.xlu0 %153
        %v155 = vrcp.pop %v154
        %v156 = vmul.f32 %v151, %v155
        %v157 = vld [vmem:[%s129] sm:$0xff]
        %v158 = vadd.f32 %v156, 0.0
        %v159 = vadd.f32 %v157, %v158
        %160 = vst.msk [vmem:[%s129] sm:$0xff] %vm145, %v159
        %s161 = sand.u32 %s65, 1
        %s162 = scalar_lea.sflag [#allocation3], %s161
        %s163 = sand.u32 %s65, 1
        %s164 = smul.addr %s163, 8
        %s165 = scalar_lea.vmem [#allocation2], %s164
        // Predicated region
        $region29: #{tpu_custom_call.1} parent=23 // pred_check
          %p166 = pneg %p75
        $region30: #{tpu_custom_call.1} parent=23 // pred_check_branch
          %168 = sbr.rel (%p166) target = $region32
        $region31: #{tpu_custom_call.1} parent=23 // pred_region
          %s170 = ssub.s32 128, 128
          %171 = vsyncadd %s162, %s170
          %s172 = smul.addr %s19, 128
          %s173 = scalar_lea.hbm %s1, %s172
          %s175 = sshll.u32 %s165, 4
          %s176 = int_to_ptr.vmem [resolvable:$true] %s175
          %178 = dma.vmem_to_hbm [thread:$0]  %s176, 128, %s173, %s162
        $region32: #{tpu_custom_call.1} parent=23 // pred_fallthru
          _
      $region24: #{tpu_custom_call.1} parent=5 // pred_fallthru
        _
      %p179 = scmp.le.s32.totalorder 2, %s10
      // Predicated region
      $region33: #{tpu_custom_call.1} parent=5 // pred_check
        %p180 = pneg %p179
      $region34: #{tpu_custom_call.1} parent=5 // pred_check_branch
        %182 = sbr.rel (%p180) target = $region36
      $region35: #{tpu_custom_call.1} parent=5 // pred_region
        %s183 = ssub.s32 %s10, 2
        // Predicated region
        $region37: #{tpu_custom_call.1} parent=35 // pred_check
          %p184 = pneg %p81
        $region38: #{tpu_custom_call.1} parent=35 // pred_check_branch
          %186 = sbr.rel (%p184) target = $region40
        $region39: #{tpu_custom_call.1} parent=35 // pred_region
          %s187 = sand.u32 %s66, 1
          %s188 = scalar_lea.sflag [#allocation3], %s187
          %s189 = sand.u32 %s66, 1
          %s190 = smul.addr %s189, 8
          %s191 = scalar_lea.vmem [#allocation2], %s190
          %192 = dma.done %s188, 128
        $region40: #{tpu_custom_call.1} parent=35 // pred_fallthru
          _
      $region36: #{tpu_custom_call.1} parent=5 // pred_fallthru
        _
    $region6: #{tpu_custom_call.1} parent=1 // loop_footer
      %s14 = sadd.s32 1, %s10
    $region7: #{tpu_custom_call.1} parent=1 // loop_footer_branch
      %9 = sbr.rel target = $region3
    $region8: #{tpu_custom_call.1} parent=1 // loop_exit
      _
    %193 = vsyncpa [#allocation3], 1
    %s194 = scalar_lea.sflag [#allocation3], 1
    %195 = vsyncpa %s194, 1

</llo_original>
